<compile_context>
chip_gen: v7x
topology: tpu7x:2x2x1
jax: 0.10.0
libtpu: 0.0.40
codegen_flags: <defaults>
</compile_context>

<pallas_src>
import functools

import jax
import jax.numpy as jnp
from jax.experimental import pallas as pl
from jax.experimental.pallas import tpu as pltpu


# ---------------------------------------------------------------------------
# Primary path: pure HBM->HBM DMA concat (no VMEM staging, no grid).
# ---------------------------------------------------------------------------

def _concat_dma_kernel(x_hbm, p_hbm, o_hbm, sem, *, d_state: int):
    # Two direct HBM->HBM strided DMAs writing disjoint column ranges of the
    # output.  Overlap both transfers, then wait on both.
    cp_x = pltpu.make_async_copy(x_hbm, o_hbm.at[:, :d_state], sem.at[0])
    cp_p = pltpu.make_async_copy(p_hbm, o_hbm.at[:, d_state:], sem.at[1])
    cp_x.start()
    cp_p.start()
    cp_x.wait()
    cp_p.wait()


def _tensor_dim_extend_dma(x: jax.Array, param: jax.Array) -> jax.Array:
    d_inner, d_state = x.shape
    _, n = param.shape
    out_cols = d_state + n
    dtype_bytes = jnp.dtype(x.dtype).itemsize

    kernel = functools.partial(_concat_dma_kernel, d_state=d_state)
    return pl.pallas_call(
        kernel,
        out_shape=jax.ShapeDtypeStruct((d_inner, out_cols), x.dtype),
        in_specs=[
            pl.BlockSpec(memory_space=pl.ANY),
            pl.BlockSpec(memory_space=pl.ANY),
        ],
        out_specs=pl.BlockSpec(memory_space=pl.ANY),
        scratch_shapes=[pltpu.SemaphoreType.DMA((2,))],
        cost_estimate=pl.CostEstimate(
            flops=0,
            transcendentals=0,
            bytes_accessed=2 * d_inner * out_cols * dtype_bytes,
        ),
    )(x, param)


# ---------------------------------------------------------------------------
# Fallback path: VMEM-staged tiled concat (previously verified on HW).
# ---------------------------------------------------------------------------

_VMEM_BUDGET_BYTES = 24 * 1024 * 1024   # live double-buffered footprint cap (v7x-safe)
_VMEM_LIMIT_BYTES = 32 * 1024 * 1024    # explicit scoped-VMEM limit
_MAX_BLOCK_ROWS = 4096
_LANE = 128


def _round_up(v: int, m: int) -> int:
    return -(-v // m) * m


def _sublane_pack(dtype) -> int:
    # Rows per packed sublane tile: f32 -> 8, bf16 -> 16, int8 -> 32.
    return max(8, 32 // jnp.dtype(dtype).itemsize)


def _choose_block_rows(d_inner: int, d_state: int, n: int, dtype) -> int:
    """Largest pack-aligned row tile whose lane-padded, double-buffered
    footprint (x + param + out tiles) fits the VMEM budget."""
    pack = _sublane_pack(dtype)
    dtype_bytes = jnp.dtype(dtype).itemsize
    # Each VMEM tile pads its last dim up to a multiple of 128 lanes.
    per_row_bytes = 2 * dtype_bytes * (
        _round_up(d_state, _LANE) + _round_up(n, _LANE) + _round_up(d_state + n, _LANE)
    )
    by_vmem = _VMEM_BUDGET_BYTES // per_row_bytes
    by_vmem = max(pack, (by_vmem // pack) * pack)
    block_rows = min(_MAX_BLOCK_ROWS, by_vmem)
    # No forced split: on single-TC v5e/v6e an extra grid step is pure
    # overhead, and for this tiny copy it is not worth it on v7x either.
    if block_rows >= d_inner:
        block_rows = d_inner
    return block_rows


def _concat_vmem_kernel(x_ref, p_ref, o_ref, *, d_state: int):
    # Wide x slab first (plain store), then the small n-wide lane-offset store.
    o_ref[:, :d_state] = x_ref[...]
    o_ref[:, d_state:] = p_ref[...]


def _tensor_dim_extend_vmem(x: jax.Array, param: jax.Array,
                            block_rows: int | None = None) -> jax.Array:
    d_inner, d_state = x.shape
    _, n = param.shape
    out_cols = d_state + n
    dtype_bytes = jnp.dtype(x.dtype).itemsize
    pack = _sublane_pack(x.dtype)

    if block_rows is None:
        block_rows = _choose_block_rows(d_inner, d_state, n, x.dtype)
    if block_rows >= d_inner:
        block_rows = d_inner            # full-extent row block is always legal
    else:
        block_rows = _round_up(block_rows, pack)  # enforce packed-sublane rows

    grid = (pl.cdiv(d_inner, block_rows),)
    kernel = functools.partial(_concat_vmem_kernel, d_state=d_state)

    return pl.pallas_call(
        kernel,
        out_shape=jax.ShapeDtypeStruct((d_inner, out_cols), x.dtype),
        grid_spec=pltpu.PrefetchScalarGridSpec(
            num_scalar_prefetch=0,
            grid=grid,
            in_specs=[
                pl.BlockSpec((block_rows, d_state), lambda i: (i, 0)),
                pl.BlockSpec((block_rows, n), lambda i: (i, 0)),
            ],
            out_specs=pl.BlockSpec((block_rows, out_cols), lambda i: (i, 0)),
        ),
        compiler_params=pltpu.CompilerParams(
            dimension_semantics=("parallel",),
            vmem_limit_bytes=_VMEM_LIMIT_BYTES,
        ),
        cost_estimate=pl.CostEstimate(
            flops=0,
            transcendentals=0,
            bytes_accessed=2 * d_inner * out_cols * dtype_bytes,
        ),
    )(x, param)


# ---------------------------------------------------------------------------
# Public wrapper.
# ---------------------------------------------------------------------------

def tensor_dim_extend(x: jax.Array, param: jax.Array, *,
                      block_rows: int | None = None,
                      force_vmem_path: bool = False) -> jax.Array:
    """Pallas equivalent of TensorDimExtend.forward for dim=1 ('A_log' path).

    x:     (d_inner, d_state)
    param: (d_inner, n)        same dtype as x
    returns (d_inner, d_state + n)
    """
    assert x.dtype == param.dtype, "dtype mismatch (module asserts out.dtype == param.dtype)"
    assert x.ndim == 2 and param.ndim == 2
    assert x.shape[0] == param.shape[0]

    if not force_vmem_path and block_rows is None:
        try:
            return _tensor_dim_extend_dma(x, param)
        except Exception:
            # Lowering of the HBM->HBM DMA path failed on this backend;
            # fall back to the VMEM-staged tiled path.
            pass
    return _tensor_dim_extend_vmem(x, param, block_rows=block_rows)


def make_dimex_param(a_log: jax.Array, n: int) -> jax.Array:
    """Deterministic parameter init matching update_layer for 'A_log':
    param_init = A_log[:, -1:].repeat(1, n)."""
    return jnp.repeat(a_log[:, -1:], n, axis=1)


if __name__ == "__main__":
    key = jax.random.PRNGKey(0)
    k1, k2, k3 = jax.random.split(key, 3)

    # (dtype, d_inner, d_state, n, explicit block_rows for the VMEM path)
    cases = [
        (jnp.float32, 32, 16, 8, None),
        (jnp.bfloat16, 200, 16, 8, None),
        (jnp.float32, 200, 24, 8, 64),
    ]

    for (dtype, d_inner, d_state, n, br), k in zip(cases, (k1, k2, k3)):
        # forward input x is the base A_log tensor (same shape/dtype as base_layer).
        x = jax.random.normal(k, (d_inner, d_state), dtype=jnp.float32).astype(dtype)
        # Extension parameter, initialized exactly as update_layer does.
        param = make_dimex_param(x, n)
        ref = jnp.concatenate([x, param], axis=1)

        # Primary (pure-DMA) path.
        out = jax.block_until_ready(tensor_dim_extend(x, param))
        assert out.shape == (d_inner, d_state + n)
        assert out.dtype == dtype
        assert jnp.array_equal(out, ref), ("dma", str(dtype), d_inner, d_state, n)

        # Fallback (VMEM-staged) path, exercised explicitly.
        out_v = jax.block_until_ready(
            tensor_dim_extend(x, param, block_rows=br, force_vmem_path=True))
        assert jnp.array_equal(out_v, ref), ("vmem", str(dtype), d_inner, d_state, n, br)

    print("KERNEL_OK")
</pallas_src>

<mosaic_0001>
module attributes {stable_mosaic.version = 11 : i64} {
  func.func @_concat_dma_kernel(%arg0: memref<32x16xf32, #tpu.memory_space<any>>, %arg1: memref<32x8xf32, #tpu.memory_space<any>>, %arg2: memref<32x24xf32, #tpu.memory_space<any>>, %arg3: memref<2x!tpu.dma_semaphore, #tpu.memory_space<semaphore_mem>>) attributes {dimension_semantics = [], scalar_prefetch = 0 : i64, scratch_operands = 1 : i64, tpu.core_type = #tpu.core_type<tc>} {
    %c0_i32 = arith.constant 0 : i32
    %c0_i32_0 = arith.constant 0 : i32
    %c0_i32_1 = arith.constant 0 : i32
    %0 = tpu.memref_slice %arg2[%c0_i32_0, %c0_i32_1] : memref<32x24xf32, #tpu.memory_space<any>> -> memref<32x16xf32, #tpu.memory_space<any>>
    %1 = tpu.memref_slice %arg3[%c0_i32] : memref<2x!tpu.dma_semaphore, #tpu.memory_space<semaphore_mem>> -> memref<1x!tpu.dma_semaphore, #tpu.memory_space<semaphore_mem>>
    %2 = tpu.memref_squeeze %1 : memref<1x!tpu.dma_semaphore, #tpu.memory_space<semaphore_mem>> -> memref<!tpu.dma_semaphore, #tpu.memory_space<semaphore_mem>>
    tpu.enqueue_dma source(%arg0 : memref<32x16xf32, #tpu.memory_space<any>>) target(%0 : memref<32x16xf32, #tpu.memory_space<any>>) target_semaphore(%2 : memref<!tpu.dma_semaphore, #tpu.memory_space<semaphore_mem>>)
    %c1_i32 = arith.constant 1 : i32
    %c0_i32_2 = arith.constant 0 : i32
    %c16_i32 = arith.constant 16 : i32
    %3 = tpu.memref_slice %arg2[%c0_i32_2, %c16_i32] : memref<32x24xf32, #tpu.memory_space<any>> -> memref<32x8xf32, #tpu.memory_space<any>>
    %4 = tpu.memref_slice %arg3[%c1_i32] : memref<2x!tpu.dma_semaphore, #tpu.memory_space<semaphore_mem>> -> memref<1x!tpu.dma_semaphore, #tpu.memory_space<semaphore_mem>>
    %5 = tpu.memref_squeeze %4 : memref<1x!tpu.dma_semaphore, #tpu.memory_space<semaphore_mem>> -> memref<!tpu.dma_semaphore, #tpu.memory_space<semaphore_mem>>
    tpu.enqueue_dma source(%arg1 : memref<32x8xf32, #tpu.memory_space<any>>) target(%3 : memref<32x8xf32, #tpu.memory_space<any>>) target_semaphore(%5 : memref<!tpu.dma_semaphore, #tpu.memory_space<semaphore_mem>>)
    %c0_i32_3 = arith.constant 0 : i32
    %c0_i32_4 = arith.constant 0 : i32
    %c0_i32_5 = arith.constant 0 : i32
    %6 = tpu.memref_slice %arg2[%c0_i32_4, %c0_i32_5] : memref<32x24xf32, #tpu.memory_space<any>> -> memref<32x16xf32, #tpu.memory_space<any>>
    %7 = tpu.memref_slice %arg3[%c0_i32_3] : memref<2x!tpu.dma_semaphore, #tpu.memory_space<semaphore_mem>> -> memref<1x!tpu.dma_semaphore, #tpu.memory_space<semaphore_mem>>
    %8 = tpu.memref_squeeze %7 : memref<1x!tpu.dma_semaphore, #tpu.memory_space<semaphore_mem>> -> memref<!tpu.dma_semaphore, #tpu.memory_space<semaphore_mem>>
    tpu.wait_dma2 semaphore(%8 : memref<!tpu.dma_semaphore, #tpu.memory_space<semaphore_mem>>) src(%arg0 : memref<32x16xf32, #tpu.memory_space<any>>) dst(%6 : memref<32x16xf32, #tpu.memory_space<any>>)
    %c1_i32_6 = arith.constant 1 : i32
    %c0_i32_7 = arith.constant 0 : i32
    %c16_i32_8 = arith.constant 16 : i32
    %9 = tpu.memref_slice %arg2[%c0_i32_7, %c16_i32_8] : memref<32x24xf32, #tpu.memory_space<any>> -> memref<32x8xf32, #tpu.memory_space<any>>
    %10 = tpu.memref_slice %arg3[%c1_i32_6] : memref<2x!tpu.dma_semaphore, #tpu.memory_space<semaphore_mem>> -> memref<1x!tpu.dma_semaphore, #tpu.memory_space<semaphore_mem>>
    %11 = tpu.memref_squeeze %10 : memref<1x!tpu.dma_semaphore, #tpu.memory_space<semaphore_mem>> -> memref<!tpu.dma_semaphore, #tpu.memory_space<semaphore_mem>>
    tpu.wait_dma2 semaphore(%11 : memref<!tpu.dma_semaphore, #tpu.memory_space<semaphore_mem>>) src(%arg1 : memref<32x8xf32, #tpu.memory_space<any>>) dst(%9 : memref<32x8xf32, #tpu.memory_space<any>>)
    return
  }
}

module attributes {stable_mosaic.version = 11 : i64} {
  func.func @_concat_vmem_kernel(%arg0: i32, %arg1: memref<32x16xf32, #tpu.memory_space<vmem>>, %arg2: memref<32x8xf32, #tpu.memory_space<vmem>>, %arg3: memref<32x24xf32, #tpu.memory_space<vmem>>) attributes {dimension_semantics = [#tpu.dimension_semantics<parallel>], iteration_bounds = array<i64: 1>, scalar_prefetch = 0 : i64, scratch_operands = 0 : i64, tpu.core_type = #tpu.core_type<tc>, window_params = [{transform_indices = @transform_0, window_bounds = array<i64: 32, 16>}, {transform_indices = @transform_1, window_bounds = array<i64: 32, 8>}, {transform_indices = @transform_2, window_bounds = array<i64: 32, 24>}]} {
    %c0 = arith.constant 0 : index
    %c0_0 = arith.constant 0 : index
    %0 = vector.load %arg1[%c0, %c0_0] : memref<32x16xf32, #tpu.memory_space<vmem>>, vector<32x16xf32>
    %c0_1 = arith.constant 0 : index
    %c0_2 = arith.constant 0 : index
    %1 = vector.load %arg3[%c0_1, %c0_2] : memref<32x24xf32, #tpu.memory_space<vmem>>, vector<32x16xf32>
    tpu.vector_store %arg3[%c0_1, %c0_2], %0 {strides = array<i32>} : memref<32x24xf32, #tpu.memory_space<vmem>>, vector<32x16xf32>,
    %c0_3 = arith.constant 0 : index
    %c0_4 = arith.constant 0 : index
    %2 = vector.load %arg2[%c0_3, %c0_4] : memref<32x8xf32, #tpu.memory_space<vmem>>, vector<32x8xf32>
    %c0_5 = arith.constant 0 : index
    %c16 = arith.constant 16 : index
    %3 = vector.load %arg3[%c0_5, %c16] : memref<32x24xf32, #tpu.memory_space<vmem>>, vector<32x8xf32>
    tpu.vector_store %arg3[%c0_5, %c16], %2 {strides = array<i32>} : memref<32x24xf32, #tpu.memory_space<vmem>>, vector<32x8xf32>,
    return
  }
  func.func @transform_0(%arg0: i32) -> (i32, i32) {
    %c0_i32 = arith.constant 0 : i32
    %c0_i32_0 = arith.constant 0 : i32
    return %arg0, %c0_i32 : i32, i32
  }
  func.func @transform_1(%arg0: i32) -> (i32, i32) {
    %c0_i32 = arith.constant 0 : i32
    %c0_i32_0 = arith.constant 0 : i32
    return %arg0, %c0_i32 : i32, i32
  }
  func.func @transform_2(%arg0: i32) -> (i32, i32) {
    %c0_i32 = arith.constant 0 : i32
    %c0_i32_0 = arith.constant 0 : i32
    return %arg0, %c0_i32 : i32, i32
  }
}

</mosaic_0001>

<llo_original>
// kernel: tpu_custom_call.1
$region0: #{tpu_custom_call.1}
  #allocation0 [shape = 'u32[]', space=smem, size = 0x4, offset = 0x4, fixed_abs, tag = 'smem constant byte address 0x4 - core index']
  #allocation1 [shape = 'u32[144,128]{1,0:T(1,128)}', space=vmem, size = 0x12000, scoped, tag = 'internal scratch']
  %s0 = inlined_call_operand.vmem [shape: f32[32,16], index: 0, kind: input, shape index: {}]
  %s1 = inlined_call_operand.vmem [shape: f32[32,8], index: 1, kind: input, shape index: {}]
  %s2 = inlined_call_operand.vmem [shape: f32[32,24], index: 2, kind: output, shape index: {}]
  %s3 = sld [smem:[#allocation0]]
  $region18: #{tpu_custom_call.1} parent=0
    _
  %s5 = ssub.s32 1, %s3
  %s6 = scalar_select 0, %s5, %s3
  // Predicated region
  $region2: #{tpu_custom_call.1} parent=0 // pred_check
    _
  $region3: #{tpu_custom_call.1} parent=0 // pred_check_branch
    %8 = sbr.rel (0) target = $region5
  $region4: #{tpu_custom_call.1} parent=0 // pred_region
    _
  $region5: #{tpu_custom_call.1} parent=0 // pred_fallthru
    _
  // Predicated region
  $region6: #{tpu_custom_call.1} parent=0 // pred_check
    _
  $region7: #{tpu_custom_call.1} parent=0 // pred_check_branch
    %10 = sbr.rel (0) target = $region9
  $region8: #{tpu_custom_call.1} parent=0 // pred_region
    _
  $region9: #{tpu_custom_call.1} parent=0 // pred_fallthru
    _
  %v11 = vld [vmem:[%s0] sm:$0xff]
  %v12 = vld [vmem:[%s0 + $0x8] sm:$0xff]
  %v13 = vld [vmem:[%s0 + $0x10] sm:$0xff]
  %v14 = vld [vmem:[%s0 + $0x18] sm:$0xff]
  %vm15 = vcmask 130048
  %16 = vst.msk [vmem:[%s2] sm:$0xff] %vm15, %v11
  %17 = vst.msk [vmem:[%s2 + $0x8] sm:$0xff] %vm15, %v12
  %18 = vst.msk [vmem:[%s2 + $0x10] sm:$0xff] %vm15, %v13
  %19 = vst.msk [vmem:[%s2 + $0x18] sm:$0xff] %vm15, %v14
  %v20 = vld [vmem:[%s1] sm:$0xff]
  %v21 = vld [vmem:[%s1 + $0x8] sm:$0xff]
  %v22 = vld [vmem:[%s1 + $0x10] sm:$0xff]
  %v23 = vld [vmem:[%s1 + $0x18] sm:$0xff]
  %28 = vrot.lane.b32.xlu0 %v20, 16
  %v29 = vpop.permute.xlu0 %28
  %30 = vrot.lane.b32.xlu0 %v21, 16
  %v31 = vpop.permute.xlu0 %30
  %32 = vrot.lane.b32.xlu0 %v22, 16
  %v33 = vpop.permute.xlu0 %32
  %34 = vrot.lane.b32.xlu0 %v23, 16
  %v35 = vpop.permute.xlu0 %34
  %vm40 = vcmask 195712
  %41 = vst.msk [vmem:[%s2] sm:$0xff] %vm40, %v29
  %42 = vst.msk [vmem:[%s2 + $0x8] sm:$0xff] %vm40, %v31
  %43 = vst.msk [vmem:[%s2 + $0x10] sm:$0xff] %vm40, %v33
  %44 = vst.msk [vmem:[%s2 + $0x18] sm:$0xff] %vm40, %v35
  // Predicated region
  $region10: #{tpu_custom_call.1} parent=0 // pred_check
    _
  $region11: #{tpu_custom_call.1} parent=0 // pred_check_branch
    %46 = sbr.rel (0) target = $region13
  $region12: #{tpu_custom_call.1} parent=0 // pred_region
    _
  $region13: #{tpu_custom_call.1} parent=0 // pred_fallthru
    _
  // Predicated region
  $region14: #{tpu_custom_call.1} parent=0 // pred_check
    _
  $region15: #{tpu_custom_call.1} parent=0 // pred_check_branch
    %48 = sbr.rel (0) target = $region17
  $region16: #{tpu_custom_call.1} parent=0 // pred_region
    _
  $region17: #{tpu_custom_call.1} parent=0 // pred_fallthru
    _

</llo_original>
